<compile_context>
chip_gen: v5e
topology: v5e:2x2
jax: 0.10.0
libtpu: 0.0.40
codegen_flags: <defaults>
</compile_context>

<pallas_src>
import numpy as np
import jax
import jax.numpy as jnp
from jax.experimental import pallas as pl
from jax.experimental.pallas import tpu as pltpu


def _cdiv(a: int, b: int) -> int:
    return (a + b - 1) // b


def _vmem_capacity_bytes() -> int:
    try:
        cap = getattr(pltpu.get_tpu_info(), "vmem_capacity_bytes", None)
        if cap:
            return int(cap)
    except Exception:
        pass
    return 64 * 1024 * 1024  # conservative default (v7x per-TC VMEM)


_VMEM_CAP = _vmem_capacity_bytes()
# Per-buffer block cap: ~1/8 of physical VMEM, clamped to [2 MiB, 8 MiB].
_BLOCK_BYTES_CAP = min(8 << 20, max(2 << 20, _VMEM_CAP // 8))
# Explicit scoped-VMEM limit: double-buffered x + out blocks plus headroom,
# never more than 3/4 of physical VMEM.  (v5e's default scoped limit is only
# 16 MiB, so it must be raised explicitly for 8 MiB blocks.)
_VMEM_LIMIT_BYTES = int(min(_VMEM_CAP * 3 // 4, 4 * _BLOCK_BYTES_CAP + (4 << 20)))

# itemsize -> native sublane multiple (f32 / bf16 / int8-fp8).
_SUBLANE_UNIT = {4: 8, 2: 16, 1: 32}


def _choose_fold(B: int, L: int, sub_unit: int) -> int:
    """Pick k so (B, L) -> (B*k, L//k) fills the sublanes of each vreg."""
    if B >= sub_unit or L <= 128:
        return 1
    k_min = _cdiv(sub_unit, B)
    k_max = min(L, 4 * k_min)
    # Prefer a fold whose new row length stays a multiple of 128 lanes.
    for k in range(k_min, k_max + 1):
        if L % k == 0 and (L // k) % 128 == 0:
            return k
    # Otherwise accept a ragged-lane fold as long as rows stay lane-dense.
    for k in range(k_min, k_max + 1):
        if L % k == 0 and (L // k) >= 1024:
            return k
    return 1


def _choose_tiles(B: int, L: int, itemsize: int, sub_unit: int, cap_bytes: int):
    """Pick (TB, TL) with TB*TL*itemsize <= cap_bytes.  No padding of x:
    TL is a multiple of 128 or the full row, TB is a multiple of the sublane
    unit or the full batch dim; Pallas masks any ragged last block."""
    cap = max(sub_unit * 128, cap_bytes // itemsize)  # elements per block
    if sub_unit * L <= cap:
        TL = L                                        # whole rows per block
    else:
        TL = max(128, (cap // sub_unit // 128) * 128)
    rows_cap = max(1, cap // TL)
    if B <= rows_cap:
        TB = B                                        # block spans full batch
    else:
        TB = max(sub_unit, (rows_cap // sub_unit) * sub_unit)
    return TB, TL


def _drop_path_kernel(scale_ref, x_ref, o_ref):
    # scale_ref: (TB, 1) f32; x_ref / o_ref: (TB, TL) in the input dtype.
    # Lane-broadcast multiply in f32; the store downcasts to the input dtype.
    o_ref[...] = (x_ref[...] * scale_ref[...]).astype(o_ref.dtype)


def drop_path(x, drop_prob: float = 0.0, training: bool = False, key=None,
              *, _block_bytes_cap=None):
    """JAX/Pallas equivalent of DropPath.forward (stochastic depth)."""
    if drop_prob == 0.0 or not training:
        return x
    if drop_prob >= 1.0:
        # keep_prob == 0: every sample dropped (the torch expression would
        # produce NaNs here; zeros is the well-defined limit).
        return jnp.zeros_like(x)
    if key is None:
        key = jax.random.PRNGKey(0)

    keep_prob = 1.0 - float(drop_prob)
    orig_shape = x.shape
    B = int(orig_shape[0])
    L = int(np.prod(orig_shape[1:])) if len(orig_shape) > 1 else 1
    itemsize = int(np.dtype(x.dtype).itemsize)
    sub_unit = _SUBLANE_UNIT.get(itemsize, 8)
    cap_bytes = _BLOCK_BYTES_CAP if _block_bytes_cap is None else int(_block_bytes_cap)

    # Per-sample keep decision, hoisted out of the kernel.
    # torch: random_tensor = floor(keep_prob + rand()) in {0, 1}
    # Kept in f32 so 1/keep_prob is not rounded to the input dtype.
    u = jax.random.uniform(key, (B,), dtype=jnp.float32)
    scale = (jnp.floor(jnp.float32(keep_prob) + u) *
             jnp.float32(1.0 / keep_prob)).reshape(B, 1)

    # Lane-dense layout; fold rows into sublanes when the batch is tiny.
    k = _choose_fold(B, L, sub_unit)
    Bk, Lk = B * k, L // k
    x2 = x.reshape(Bk, Lk)
    if k > 1:
        scale = jnp.repeat(scale, k, axis=0)

    TB, TL = _choose_tiles(Bk, Lk, itemsize, sub_unit, cap_bytes)
    nB, nL = _cdiv(Bk, TB), _cdiv(Lk, TL)

    # Keep the leading ("parallel") grid axis non-degenerate so v7x can shard
    # it across both TensorCores; when nB == 1 the scale block index is
    # constant either way, so the swap is free.
    if nB == 1 and nL > 1:
        grid = (nL, nB)
        x_map = lambda j, i: (i, j)
        s_map = lambda j, i: (i, 0)
    else:
        grid = (nB, nL)
        x_map = lambda i, j: (i, j)
        s_map = lambda i, j: (i, 0)

    out = pl.pallas_call(
        _drop_path_kernel,
        out_shape=jax.ShapeDtypeStruct((Bk, Lk), x.dtype),
        grid=grid,
        in_specs=[
            pl.BlockSpec((TB, 1), s_map),
            pl.BlockSpec((TB, TL), x_map),
        ],
        out_specs=pl.BlockSpec((TB, TL), x_map),
        compiler_params=pltpu.CompilerParams(
            dimension_semantics=("parallel", "parallel"),
            vmem_limit_bytes=_VMEM_LIMIT_BYTES),
        cost_estimate=pl.CostEstimate(
            flops=Bk * Lk,
            transcendentals=0,
            bytes_accessed=2 * Bk * Lk * itemsize + Bk * 4),
    )(scale, x2)

    return out.reshape(orig_shape)


if __name__ == "__main__":
    key = jax.random.PRNGKey(0)
    kx1, kx2, kx3, kx4, kd1, kd2, kd3, kd4 = jax.random.split(key, 8)
    drop_prob = 0.3
    keep_prob = 1.0 - drop_prob

    def check(x, y, rtol=1e-5, atol=1e-6):
        xn = np.asarray(x, dtype=np.float32)
        yn = np.asarray(y, dtype=np.float32)
        for b in range(xn.shape[0]):
            dropped = np.allclose(yn[b], 0.0, atol=atol)
            kept = np.allclose(yn[b], xn[b] / keep_prob, rtol=rtol, atol=atol)
            assert dropped or kept, f"sample {b} is not a valid DropPath output"

    # (B, N, D) transformer-token layout used by the MAE encoder.
    x = jax.random.normal(kx1, (2, 8, 32), dtype=jnp.float32)
    # eval mode (or drop_prob == 0) is an identity -- no kernel launched.
    assert jnp.array_equal(drop_path(x, drop_prob, training=False), x)
    check(x, jax.block_until_ready(drop_path(x, drop_prob, True, kd1)))

    # 4-D input whose flattened per-sample length is NOT a multiple of 128
    # (whole-array block, no padding).
    x4 = jax.random.normal(kx2, (2, 4, 15, 10), dtype=jnp.float32)
    check(x4, jax.block_until_ready(drop_path(x4, drop_prob, True, kd2)))

    # bf16 input exercising the small-batch sublane fold (B=2 -> 16 rows).
    xb = jax.random.normal(kx3, (2, 4, 256), dtype=jnp.bfloat16)
    check(xb, jax.block_until_ready(drop_path(xb, drop_prob, True, kd3)),
          rtol=2e-2, atol=1e-2)

    # Forced-small block cap: multi-block grid with ragged last blocks on both
    # axes, exercising the no-padding masked path.
    xr = jax.random.normal(kx4, (10, 5, 131), dtype=jnp.float32)
    check(xr, jax.block_until_ready(
        drop_path(xr, drop_prob, True, kd4, _block_bytes_cap=8 * 1024)))

    print("KERNEL_OK")
</pallas_src>

<mosaic_0001>
module attributes {stable_mosaic.version = 11 : i64} {
  func.func @_drop_path_kernel(%arg0: i32, %arg1: i32, %arg2: memref<2x1xf32, #tpu.memory_space<vmem>>, %arg3: memref<2x256xf32, #tpu.memory_space<vmem>>, %arg4: memref<2x256xf32, #tpu.memory_space<vmem>>) attributes {dimension_semantics = [#tpu.dimension_semantics<parallel>, #tpu.dimension_semantics<parallel>], iteration_bounds = array<i64: 1, 1>, scalar_prefetch = 0 : i64, scratch_operands = 0 : i64, tpu.core_type = #tpu.core_type<tc>, window_params = [{transform_indices = @transform_0, window_bounds = array<i64: 2, 1>}, {transform_indices = @transform_1, window_bounds = array<i64: 2, 256>}, {transform_indices = @transform_2, window_bounds = array<i64: 2, 256>}]} {
    %c0 = arith.constant 0 : index
    %c0_0 = arith.constant 0 : index
    %0 = vector.load %arg3[%c0, %c0_0] : memref<2x256xf32, #tpu.memory_space<vmem>>, vector<2x256xf32>
    %c0_1 = arith.constant 0 : index
    %c0_2 = arith.constant 0 : index
    %1 = vector.load %arg2[%c0_1, %c0_2] : memref<2x1xf32, #tpu.memory_space<vmem>>, vector<2x1xf32>
    %2 = vector.broadcast %1 : vector<2x1xf32> to vector<2x256xf32>
    %3 = arith.mulf %0, %2 : vector<2x256xf32>
    %c0_3 = arith.constant 0 : index
    %c0_4 = arith.constant 0 : index
    %4 = vector.load %arg4[%c0_3, %c0_4] : memref<2x256xf32, #tpu.memory_space<vmem>>, vector<2x256xf32>
    tpu.vector_store %arg4[%c0_3, %c0_4], %3 {strides = array<i32>} : memref<2x256xf32, #tpu.memory_space<vmem>>, vector<2x256xf32>,
    return
  }
  func.func @transform_0(%arg0: i32, %arg1: i32) -> (i32, i32) {
    %c0_i32 = arith.constant 0 : i32
    %c0_i32_0 = arith.constant 0 : i32
    return %arg0, %c0_i32 : i32, i32
  }
  func.func @transform_1(%arg0: i32, %arg1: i32) -> (i32, i32) {
    %c0_i32 = arith.constant 0 : i32
    return %arg0, %arg1 : i32, i32
  }
  func.func @transform_2(%arg0: i32, %arg1: i32) -> (i32, i32) {
    %c0_i32 = arith.constant 0 : i32
    return %arg0, %arg1 : i32, i32
  }
}

</mosaic_0001>

<llo_original>
// kernel: tpu_custom_call.1
$region0: #{tpu_custom_call.1}
  #allocation0 [shape = 'u32[]', space=smem, size = 0x4, offset = 0x4, fixed_abs, tag = 'smem constant byte address 0x4 - core index']
  #allocation1 [shape = 'u32[72,128]{1,0:T(1,128)}', space=vmem, size = 0x9000, scoped, tag = 'internal scratch']
  %s0 = inlined_call_operand.vmem [shape: f32[2,1], index: 0, kind: input, shape index: {}]
  %s1 = inlined_call_operand.hbm [shape: f32[2,256], index: 1, kind: input, shape index: {}]
  %s2 = inlined_call_operand.hbm [shape: f32[2,256], index: 2, kind: output, shape index: {}]
  %s3 = sld [smem:[#allocation0]]
  $region22: #{tpu_custom_call.1} parent=0
    _
  %s5 = ssub.s32 1, %s3
  %s6 = scalar_select 0, %s5, %s3
  $region1: #{tpu_custom_call.1} parent=0
    #allocation2 [shape = 'u8[2048]{0}', space=vmem, size = 0x800, scoped, tag = 'input window, operand 1, single buffered']
    #allocation3 [shape = 's32[1]{0}', space=sflag, size = 0x4, scoped, tag = 'scoped memory for tpu_custom_call.1']
    #allocation4 [shape = 's32[1]{0}', space=sflag, size = 0x4, scoped, tag = 'scoped memory for tpu_custom_call.1']
    #allocation5 [shape = 'u8[2048]{0}', space=vmem, size = 0x800, scoped, tag = 'output window, operand 0, single buffered']
    %7 = vsyncpa [#allocation3], 0
    %8 = vsyncpa [#allocation4], 0
    // Predicated region
    $region2: #{tpu_custom_call.1} parent=1 // pred_check
      _
    $region3: #{tpu_custom_call.1} parent=1 // pred_check_branch
      %10 = sbr.rel (0) target = $region5
    $region4: #{tpu_custom_call.1} parent=1 // pred_region
      _
    $region5: #{tpu_custom_call.1} parent=1 // pred_fallthru
      _
    // Predicated region
    $region6: #{tpu_custom_call.1} parent=1 // pred_check
      _
    $region7: #{tpu_custom_call.1} parent=1 // pred_check_branch
      %12 = sbr.rel (0) target = $region9
    $region8: #{tpu_custom_call.1} parent=1 // pred_region
      %14 = vsyncadd [#allocation3], 0
      %s16 = sshll.u32 %s1, 4
      %s17 = int_to_ptr.hbm [resolvable:$true] %s16
      %s18 = sshll.u32 [#allocation2], 4
      %s19 = int_to_ptr.vmem [resolvable:$true] %s18
      %21 = dma.hbm_to_vmem [thread:$0]  %s17, 64, %s19, [#allocation3]
    $region9: #{tpu_custom_call.1} parent=1 // pred_fallthru
      _
    // Predicated region
    $region10: #{tpu_custom_call.1} parent=1 // pred_check
      _
    $region11: #{tpu_custom_call.1} parent=1 // pred_check_branch
      %23 = sbr.rel (0) target = $region13
    $region12: #{tpu_custom_call.1} parent=1 // pred_region
      %25 = dma.done [#allocation3], 64
    $region13: #{tpu_custom_call.1} parent=1 // pred_fallthru
      _
    %v26 = vld [vmem:[#allocation2] sm:$0xf]
    %v27 = vld [vmem:[%s0] sm:$0x3]
    %29 = vset.pattern.permute.xlu0 0
    %30 = vperm.xlu0 %29, %v27
    %v31 = vpop.permute.xlu0 %30
    %v33 = vunpack.c.l.s4 269488144
    %v34 = vunpack.c.0.s8 %v33
    %v35 = vperm.slane %v31, %v34
    %v37 = vmul.f32 %v26, %v35
    %38 = vst [vmem:[#allocation5] sm:$0xf] %v37
    // Predicated region
    $region14: #{tpu_custom_call.1} parent=1 // pred_check
      _
    $region15: #{tpu_custom_call.1} parent=1 // pred_check_branch
      %40 = sbr.rel (0) target = $region17
    $region16: #{tpu_custom_call.1} parent=1 // pred_region
      %42 = vsyncadd [#allocation4], 0
      %s44 = sshll.u32 [#allocation5], 4
      %s45 = int_to_ptr.vmem [resolvable:$true] %s44
      %s46 = sshll.u32 %s2, 4
      %s47 = int_to_ptr.hbm [resolvable:$true] %s46
      %49 = dma.vmem_to_hbm [thread:$0]  %s45, 64, %s47, [#allocation4]
    $region17: #{tpu_custom_call.1} parent=1 // pred_fallthru
      _
    // Predicated region
    $region18: #{tpu_custom_call.1} parent=1 // pred_check
      _
    $region19: #{tpu_custom_call.1} parent=1 // pred_check_branch
      %51 = sbr.rel (0) target = $region21
    $region20: #{tpu_custom_call.1} parent=1 // pred_region
      %53 = dma.done [#allocation4], 64
    $region21: #{tpu_custom_call.1} parent=1 // pred_fallthru
      _
    %54 = vsyncpa [#allocation3], 1
    %55 = vsyncpa [#allocation4], 1

</llo_original>
